<compile_context>
chip_gen: v6e
topology: v6e:2x2x1
jax: 0.10.0
libtpu: 0.0.40
codegen_flags: <defaults>
</compile_context>

<pallas_src>
import numpy as np
import jax
import jax.numpy as jnp
from jax.experimental import pallas as pl
from jax.experimental.pallas import tpu as pltpu

_F32_MAX = np.float32(np.finfo(np.float32).max)
_F32_MIN = np.float32(np.finfo(np.float32).min)


def _number_preprocess_kernel(params_ref, v_ref, o_ref):
    # params (SMEM scalars): [computed_fill_value, mean, std, outlier_threshold,
    #                         computed_outlier_fill_value]
    fill = params_ref[0]
    mu = params_ref[1]
    sigma = params_ref[2]
    thr = params_ref[3]
    ofill = params_ref[4]

    # Hoisted scalar work (done once per grid step, not per element).
    inv_sigma = 1.0 / sigma
    z_ofill = (ofill - mu) * inv_sigma  # z-value an outlier gets after replacement

    # Load in native dtype, widen in-register (no-op for f32, halves HBM read for bf16).
    v = v_ref[...].astype(jnp.float32)

    # torch.nan_to_num defaults: nan -> fill, +inf -> f32 max, -inf -> f32 min
    v = jnp.where(jnp.isnan(v), fill, v)
    v = jnp.where(v == jnp.inf, _F32_MAX, v)
    v = jnp.where(v == -jnp.inf, _F32_MIN, v)

    # Single zscore; outlier test and the final transform share it.
    z = (v - mu) * inv_sigma
    o_ref[...] = jnp.where(jnp.abs(z) > thr, z_ofill, z)


def number_preprocessing(x, params, *, lanes=1024, max_block_bytes=2 * 1024 * 1024):
    """x: arbitrary-shaped numeric array. params: [5] float32 scalar parameters.

    Returns float32 array of the same shape as x (matches _NumberPreprocessing.forward).
    """
    orig_shape = x.shape
    flat = jnp.reshape(x, (-1,))
    n = flat.shape[0]

    # Lane-dense 2-D view: last dim is a large multiple of 128 -> unmasked full-width stores.
    rows = -(-n // lanes)  # cdiv
    # Row tile: largest multiple of 8 whose f32 block stays under max_block_bytes.
    # (2 MiB block * 2 arrays * 2 buffers = 8 MiB resident, safe on v5e/v6e/v7x.)
    tb_max = max(8, (max_block_bytes // (lanes * 4)) // 8 * 8)
    tb = min(tb_max, -(-rows // 8) * 8)
    rows_padded = -(-rows // tb) * tb
    pad = rows_padded * lanes - n
    if pad:
        flat = jnp.pad(flat, (0, pad))
    x2 = flat.reshape(rows_padded, lanes)

    out = pl.pallas_call(
        _number_preprocess_kernel,
        out_shape=jax.ShapeDtypeStruct((rows_padded, lanes), jnp.float32),
        grid=(rows_padded // tb,),
        in_specs=[
            pl.BlockSpec(memory_space=pltpu.SMEM),      # scalar params, whole array
            pl.BlockSpec((tb, lanes), lambda i: (i, 0)),  # lane-dense input tile
        ],
        out_specs=pl.BlockSpec((tb, lanes), lambda i: (i, 0)),
        compiler_params=pltpu.CompilerParams(
            dimension_semantics=("parallel",),          # lets v7x shard over both TCs
            vmem_limit_bytes=32 * 1024 * 1024,          # headroom for double-buffered tiles
        ),
    )(params, x2)

    return out.reshape(-1)[:n].reshape(orig_shape)


def _reference(x, params):
    fill, mu, sigma, thr, ofill = [float(p) for p in params]
    v = np.asarray(x, dtype=np.float32)
    v = np.where(np.isnan(v), fill, v)
    v = np.where(v == np.inf, np.finfo(np.float32).max, v)
    v = np.where(v == -np.inf, np.finfo(np.float32).min, v)
    z = (v - mu) / sigma
    v = np.where(np.abs(z) > thr, ofill, v)
    return ((v - mu) / sigma).astype(np.float32)


if __name__ == "__main__":
    key = jax.random.PRNGKey(0)

    # Deterministic "metadata" parameters (synthetic, not a checkpoint load).
    computed_fill_value = 0.0
    mean, std = 0.5, 2.0
    outlier_threshold = 2.5
    computed_outlier_fill_value = 0.5
    params = jnp.array(
        [computed_fill_value, mean, std, outlier_threshold, computed_outlier_fill_value],
        dtype=jnp.float32,
    )

    # Case 1: tidy shape.
    B, F = 16, 128
    x = jax.random.normal(key, (B, F), dtype=jnp.float32) * 3.0 + 0.5
    x = x.at[0, 0].set(jnp.nan)
    x = x.at[1, 5].set(jnp.inf)
    x = x.at[2, 7].set(-jnp.inf)
    x = x.at[3, 3].set(1e6)

    out = jax.block_until_ready(number_preprocessing(x, params))
    ref = _reference(np.asarray(x), np.asarray(params))
    np.testing.assert_allclose(np.asarray(out), ref, rtol=1e-5, atol=1e-6)

    # Case 2: ragged shape (exercises flatten + pad + tail slice).
    x2 = jax.random.normal(jax.random.PRNGKey(1), (7, 33), dtype=jnp.float32) * 2.0 + 0.5
    x2 = x2.at[0, 0].set(jnp.nan)
    x2 = x2.at[2, 10].set(jnp.inf)
    out2 = jax.block_until_ready(number_preprocessing(x2, params))
    ref2 = _reference(np.asarray(x2), np.asarray(params))
    np.testing.assert_allclose(np.asarray(out2), ref2, rtol=1e-5, atol=1e-6)

    print("KERNEL_OK")
</pallas_src>

<mosaic_0001>
module attributes {stable_mosaic.version = 11 : i64} {
  func.func @_number_preprocess_kernel(%arg0: i32, %arg1: memref<5xf32, #tpu.memory_space<smem>>, %arg2: memref<8x1024xf32, #tpu.memory_space<vmem>>, %arg3: memref<8x1024xf32, #tpu.memory_space<vmem>>) attributes {dimension_semantics = [#tpu.dimension_semantics<parallel>], iteration_bounds = array<i64: 1>, scalar_prefetch = 0 : i64, scratch_operands = 0 : i64, tpu.core_type = #tpu.core_type<tc>, window_params = [{transform_indices = @transform_0, window_bounds = array<i64: 5>}, {transform_indices = @transform_1, window_bounds = array<i64: 8, 1024>}, {transform_indices = @transform_2, window_bounds = array<i64: 8, 1024>}]} {
    %c0 = arith.constant 0 : index
    %0 = memref.load %arg1[%c0] : memref<5xf32, #tpu.memory_space<smem>>
    %c1 = arith.constant 1 : index
    %1 = memref.load %arg1[%c1] : memref<5xf32, #tpu.memory_space<smem>>
    %c2 = arith.constant 2 : index
    %2 = memref.load %arg1[%c2] : memref<5xf32, #tpu.memory_space<smem>>
    %c3 = arith.constant 3 : index
    %3 = memref.load %arg1[%c3] : memref<5xf32, #tpu.memory_space<smem>>
    %c4 = arith.constant 4 : index
    %4 = memref.load %arg1[%c4] : memref<5xf32, #tpu.memory_space<smem>>
    %cst = arith.constant 1.000000e+00 : f32
    %5 = arith.divf %cst, %2 : f32
    %6 = arith.subf %4, %1 : f32
    %7 = arith.mulf %6, %5 : f32
    %c0_0 = arith.constant 0 : index
    %c0_1 = arith.constant 0 : index
    %8 = vector.load %arg2[%c0_0, %c0_1] : memref<8x1024xf32, #tpu.memory_space<vmem>>, vector<8x1024xf32>
    %9 = arith.cmpf one, %8, %8 : vector<8x1024xf32>
    %10 = vector.broadcast %0 : f32 to vector<8x1024xf32>
    %11 = arith.select %9, %10, %8 : vector<8x1024xi1>, vector<8x1024xf32>
    %cst_2 = arith.constant 0x7F800000 : f32
    %12 = vector.broadcast %cst_2 : f32 to vector<8x1024xf32>
    %13 = arith.cmpf oeq, %11, %12 : vector<8x1024xf32>
    %cst_3 = arith.constant 3.40282347E+38 : f32
    %14 = vector.broadcast %cst_3 : f32 to vector<8x1024xf32>
    %15 = arith.select %13, %14, %11 : vector<8x1024xi1>, vector<8x1024xf32>
    %cst_4 = arith.constant 0xFF800000 : f32
    %16 = vector.broadcast %cst_4 : f32 to vector<8x1024xf32>
    %17 = arith.cmpf oeq, %15, %16 : vector<8x1024xf32>
    %cst_5 = arith.constant -3.40282347E+38 : f32
    %18 = vector.broadcast %cst_5 : f32 to vector<8x1024xf32>
    %19 = arith.select %17, %18, %15 : vector<8x1024xi1>, vector<8x1024xf32>
    %20 = vector.broadcast %1 : f32 to vector<8x1024xf32>
    %21 = arith.subf %19, %20 : vector<8x1024xf32>
    %22 = vector.broadcast %5 : f32 to vector<8x1024xf32>
    %23 = arith.mulf %21, %22 : vector<8x1024xf32>
    %24 = math.absf %23 : vector<8x1024xf32>
    %25 = vector.broadcast %3 : f32 to vector<8x1024xf32>
    %26 = arith.cmpf ogt, %24, %25 : vector<8x1024xf32>
    %27 = vector.broadcast %7 : f32 to vector<8x1024xf32>
    %28 = arith.select %26, %27, %23 : vector<8x1024xi1>, vector<8x1024xf32>
    %c0_6 = arith.constant 0 : index
    %c0_7 = arith.constant 0 : index
    %29 = vector.load %arg3[%c0_6, %c0_7] : memref<8x1024xf32, #tpu.memory_space<vmem>>, vector<8x1024xf32>
    tpu.vector_store %arg3[%c0_6, %c0_7], %28 {strides = array<i32>} : memref<8x1024xf32, #tpu.memory_space<vmem>>, vector<8x1024xf32>,
    return
  }
  func.func @transform_0(%arg0: i32) -> i32 {
    %c0_i32 = arith.constant 0 : i32
    %c0_i32_0 = arith.constant 0 : i32
    return %c0_i32 : i32
  }
  func.func @transform_1(%arg0: i32) -> (i32, i32) {
    %c0_i32 = arith.constant 0 : i32
    %c0_i32_0 = arith.constant 0 : i32
    return %arg0, %c0_i32 : i32, i32
  }
  func.func @transform_2(%arg0: i32) -> (i32, i32) {
    %c0_i32 = arith.constant 0 : i32
    %c0_i32_0 = arith.constant 0 : i32
    return %arg0, %c0_i32 : i32, i32
  }
}

</mosaic_0001>

<llo_original>
// kernel: tpu_custom_call.1
$region0: #{tpu_custom_call.1}
  #allocation0 [shape = 'u32[]', space=smem, size = 0x4, offset = 0x4, fixed_abs, tag = 'smem constant byte address 0x4 - core index']
  #allocation1 [shape = 'u32[144,128]{1,0:T(1,128)}', space=vmem, size = 0x12000, scoped, tag = 'internal scratch']
  %s0 = inlined_call_operand.hbm [shape: f32[5], index: 0, kind: input, shape index: {}]
  %s1 = inlined_call_operand.hbm [shape: f32[8,1024], index: 1, kind: input, shape index: {}]
  %s2 = inlined_call_operand.hbm [shape: f32[8,1024], index: 2, kind: output, shape index: {}]
  %s3 = sld [smem:[#allocation0]]
  $region26: #{tpu_custom_call.1} parent=0
    _
  %s5 = ssub.s32 1, %s3
  %s6 = scalar_select 0, %s5, %s3
  $region1: #{tpu_custom_call.1} parent=0
    #allocation2 [shape = 'u8[512]{0}', space=smem, size = 0x200, scoped, tag = 'input window, operand 0, single buffered']
    #allocation3 [shape = 's32[1]{0}', space=sflag, size = 0x4, scoped, tag = 'scoped memory for tpu_custom_call.1']
    #allocation4 [shape = 's32[1]{0}', space=sflag, size = 0x4, scoped, tag = 'scoped memory for tpu_custom_call.1']
    #allocation5 [shape = 's32[1]{0}', space=sflag, size = 0x4, scoped, tag = 'scoped memory for tpu_custom_call.1']
    #allocation6 [shape = 'u8[32768]{0}', space=vmem, size = 0x8000, scoped, tag = 'input window, operand 1, single buffered']
    #allocation7 [shape = 'u8[32768]{0}', space=vmem, size = 0x8000, scoped, tag = 'output window, operand 0, single buffered']
    %7 = vsyncpa [#allocation5], 0
    %8 = vsyncpa [#allocation3], 0
    %9 = vsyncpa [#allocation4], 0
    // Predicated region
    $region2: #{tpu_custom_call.1} parent=1 // pred_check
      _
    $region3: #{tpu_custom_call.1} parent=1 // pred_check_branch
      %11 = sbr.rel (0) target = $region5
    $region4: #{tpu_custom_call.1} parent=1 // pred_region
      %s13 = ssub.s32 16, 16
      %14 = vsyncadd [#allocation5], %s13
      %17 = dma.hbm_to_smem %s0, 16, [#allocation2], [#allocation5]
    $region5: #{tpu_custom_call.1} parent=1 // pred_fallthru
      _
    // Predicated region
    $region6: #{tpu_custom_call.1} parent=1 // pred_check
      _
    $region7: #{tpu_custom_call.1} parent=1 // pred_check_branch
      %19 = sbr.rel (0) target = $region9
    $region8: #{tpu_custom_call.1} parent=1 // pred_region
      %s21 = ssub.s32 1024, 1024
      %22 = vsyncadd [#allocation3], %s21
      %s24 = sshll.u32 [#allocation6], 4
      %s25 = int_to_ptr.vmem [resolvable:$true] %s24
      %27 = dma.hbm_to_vmem [thread:$0]  %s1, 1024, %s25, [#allocation3]
    $region9: #{tpu_custom_call.1} parent=1 // pred_fallthru
      _
    // Predicated region
    $region10: #{tpu_custom_call.1} parent=1 // pred_check
      _
    $region11: #{tpu_custom_call.1} parent=1 // pred_check_branch
      %29 = sbr.rel (0) target = $region13
    $region12: #{tpu_custom_call.1} parent=1 // pred_region
      %30 = dma.done [#allocation5], 16
    $region13: #{tpu_custom_call.1} parent=1 // pred_fallthru
      _
    // Predicated region
    $region14: #{tpu_custom_call.1} parent=1 // pred_check
      _
    $region15: #{tpu_custom_call.1} parent=1 // pred_check_branch
      %32 = sbr.rel (0) target = $region17
    $region16: #{tpu_custom_call.1} parent=1 // pred_region
      %33 = dma.done [#allocation3], 1024
    $region17: #{tpu_custom_call.1} parent=1 // pred_fallthru
      _
    %34 = sfence
    %s35 = sld [smem:[#allocation2]]
    %s36 = sld [smem:[#allocation2 + $0x1]]
    %s37 = sld [smem:[#allocation2 + $0x2]]
    %s38 = sld [smem:[#allocation2 + $0x3]]
    %s39 = sld [smem:[#allocation2 + $0x4]]
    %v40 = vstv %s37
    %v41 = vrcp.pop %v40
    %s42 = vtos %v41
    %s43 = ssub.f32 %s39, %s36
    %s44 = smul.f32 %s43, %s42
    %v45 = vld [vmem:[#allocation6] sm:$0xff]
    %v46 = vld [vmem:[#allocation6 + $0x8] sm:$0xff]
    %v47 = vld [vmem:[#allocation6 + $0x10] sm:$0xff]
    %v48 = vld [vmem:[#allocation6 + $0x18] sm:$0xff]
    %v49 = vld [vmem:[#allocation6 + $0x20] sm:$0xff]
    %v50 = vld [vmem:[#allocation6 + $0x28] sm:$0xff]
    %v51 = vld [vmem:[#allocation6 + $0x30] sm:$0xff]
    %v52 = vld [vmem:[#allocation6 + $0x38] sm:$0xff]
    %vm53 = vcmp.ne.f32.partialorder %v45, %v45
    %vm54 = vcmp.ne.f32.partialorder %v46, %v46
    %vm55 = vcmp.ne.f32.partialorder %v47, %v47
    %vm56 = vcmp.ne.f32.partialorder %v48, %v48
    %vm57 = vcmp.ne.f32.partialorder %v49, %v49
    %vm58 = vcmp.ne.f32.partialorder %v50, %v50
    %vm59 = vcmp.ne.f32.partialorder %v51, %v51
    %vm60 = vcmp.ne.f32.partialorder %v52, %v52
    %v61 = vstv %s35
    %v62 = vsel %vm53, %v61, %v45
    %v63 = vsel %vm54, %v61, %v46
    %v64 = vsel %vm55, %v61, %v47
    %v65 = vsel %vm56, %v61, %v48
    %v66 = vsel %vm57, %v61, %v49
    %v67 = vsel %vm58, %v61, %v50
    %v68 = vsel %vm59, %v61, %v51
    %v69 = vsel %vm60, %v61, %v52
    %vm70 = vcmp.eq.f32.partialorder %v62, inf
    %vm71 = vcmp.eq.f32.partialorder %v63, inf
    %vm72 = vcmp.eq.f32.partialorder %v64, inf
    %vm73 = vcmp.eq.f32.partialorder %v65, inf
    %vm74 = vcmp.eq.f32.partialorder %v66, inf
    %vm75 = vcmp.eq.f32.partialorder %v67, inf
    %vm76 = vcmp.eq.f32.partialorder %v68, inf
    %vm77 = vcmp.eq.f32.partialorder %v69, inf
    %v78 = vsel %vm70, 3.4028235e+38, %v62
    %v79 = vsel %vm71, 3.4028235e+38, %v63
    %v80 = vsel %vm72, 3.4028235e+38, %v64
    %v81 = vsel %vm73, 3.4028235e+38, %v65
    %v82 = vsel %vm74, 3.4028235e+38, %v66
    %v83 = vsel %vm75, 3.4028235e+38, %v67
    %v84 = vsel %vm76, 3.4028235e+38, %v68
    %v85 = vsel %vm77, 3.4028235e+38, %v69
    %vm86 = vcmp.eq.f32.partialorder %v78, -inf
    %vm87 = vcmp.eq.f32.partialorder %v79, -inf
    %vm88 = vcmp.eq.f32.partialorder %v80, -inf
    %vm89 = vcmp.eq.f32.partialorder %v81, -inf
    %vm90 = vcmp.eq.f32.partialorder %v82, -inf
    %vm91 = vcmp.eq.f32.partialorder %v83, -inf
    %vm92 = vcmp.eq.f32.partialorder %v84, -inf
    %vm93 = vcmp.eq.f32.partialorder %v85, -inf
    %v94 = vsel %vm86, -3.4028235e+38, %v78
    %v95 = vsel %vm87, -3.4028235e+38, %v79
    %v96 = vsel %vm88, -3.4028235e+38, %v80
    %v97 = vsel %vm89, -3.4028235e+38, %v81
    %v98 = vsel %vm90, -3.4028235e+38, %v82
    %v99 = vsel %vm91, -3.4028235e+38, %v83
    %v100 = vsel %vm92, -3.4028235e+38, %v84
    %v101 = vsel %vm93, -3.4028235e+38, %v85
    %v102 = vstv %s36
    %v103 = vsub.f32 %v94, %v102
    %v104 = vsub.f32 %v95, %v102
    %v105 = vsub.f32 %v96, %v102
    %v106 = vsub.f32 %v97, %v102
    %v107 = vsub.f32 %v98, %v102
    %v108 = vsub.f32 %v99, %v102
    %v109 = vsub.f32 %v100, %v102
    %v110 = vsub.f32 %v101, %v102
    %v111 = vstv %s42
    %v112 = vmul.f32 %v103, %v111
    %v113 = vmul.f32 %v104, %v111
    %v114 = vmul.f32 %v105, %v111
    %v115 = vmul.f32 %v106, %v111
    %v116 = vmul.f32 %v107, %v111
    %v117 = vmul.f32 %v108, %v111
    %v118 = vmul.f32 %v109, %v111
    %v119 = vmul.f32 %v110, %v111
    %v120 = vand.u32 2147483647, %v112
    %v121 = vand.u32 2147483647, %v113
    %v122 = vand.u32 2147483647, %v114
    %v123 = vand.u32 2147483647, %v115
    %v124 = vand.u32 2147483647, %v116
    %v125 = vand.u32 2147483647, %v117
    %v126 = vand.u32 2147483647, %v118
    %v127 = vand.u32 2147483647, %v119
    %v128 = vstv %s38
    %vm129 = vcmp.gt.f32.partialorder %v120, %v128
    %vm130 = vcmp.gt.f32.partialorder %v121, %v128
    %vm131 = vcmp.gt.f32.partialorder %v122, %v128
    %vm132 = vcmp.gt.f32.partialorder %v123, %v128
    %vm133 = vcmp.gt.f32.partialorder %v124, %v128
    %vm134 = vcmp.gt.f32.partialorder %v125, %v128
    %vm135 = vcmp.gt.f32.partialorder %v126, %v128
    %vm136 = vcmp.gt.f32.partialorder %v127, %v128
    %v137 = vstv %s44
    %v138 = vsel %vm129, %v137, %v112
    %v139 = vsel %vm130, %v137, %v113
    %v140 = vsel %vm131, %v137, %v114
    %v141 = vsel %vm132, %v137, %v115
    %v142 = vsel %vm133, %v137, %v116
    %v143 = vsel %vm134, %v137, %v117
    %v144 = vsel %vm135, %v137, %v118
    %v145 = vsel %vm136, %v137, %v119
    %146 = vst [vmem:[#allocation7] sm:$0xff] %v138
    %147 = vst [vmem:[#allocation7 + $0x8] sm:$0xff] %v139
    %148 = vst [vmem:[#allocation7 + $0x10] sm:$0xff] %v140
    %149 = vst [vmem:[#allocation7 + $0x18] sm:$0xff] %v141
    %150 = vst [vmem:[#allocation7 + $0x20] sm:$0xff] %v142
    %151 = vst [vmem:[#allocation7 + $0x28] sm:$0xff] %v143
    %152 = vst [vmem:[#allocation7 + $0x30] sm:$0xff] %v144
    %153 = vst [vmem:[#allocation7 + $0x38] sm:$0xff] %v145
    // Predicated region
    $region18: #{tpu_custom_call.1} parent=1 // pred_check
      _
    $region19: #{tpu_custom_call.1} parent=1 // pred_check_branch
      %155 = sbr.rel (0) target = $region21
    $region20: #{tpu_custom_call.1} parent=1 // pred_region
      %s157 = ssub.s32 1024, 1024
      %158 = vsyncadd [#allocation4], %s157
      %s160 = sshll.u32 [#allocation7], 4
      %s161 = int_to_ptr.vmem [resolvable:$true] %s160
      %163 = dma.vmem_to_hbm [thread:$0]  %s161, 1024, %s2, [#allocation4]
    $region21: #{tpu_custom_call.1} parent=1 // pred_fallthru
      _
    // Predicated region
    $region22: #{tpu_custom_call.1} parent=1 // pred_check
      _
    $region23: #{tpu_custom_call.1} parent=1 // pred_check_branch
      %165 = sbr.rel (0) target = $region25
    $region24: #{tpu_custom_call.1} parent=1 // pred_region
      %166 = dma.done [#allocation4], 1024
    $region25: #{tpu_custom_call.1} parent=1 // pred_fallthru
      _
    %167 = vsyncpa [#allocation3], 1
    %168 = vsyncpa [#allocation4], 1
    %169 = vsyncpa [#allocation5], 1

</llo_original>
